<compile_context>
chip_gen: v5e
topology: v5e:2x2
jax: 0.10.0
libtpu: 0.0.40
codegen_flags: <defaults>
</compile_context>

<pallas_src>
import functools

import jax
import jax.numpy as jnp
from jax.experimental import pallas as pl
from jax.experimental.pallas import tpu as pltpu

_LANE = 128
_VMEM_LIMIT_BYTES = 32 * 1024 * 1024   # explicit scoped-VMEM budget (safe on v5e/v6e/v7x)
_X_STREAM_BUDGET = 16 * 1024 * 1024    # budget for the double-buffered streaming x tiles


# ---------------------------------------------------------------------------
# Kernels
# ---------------------------------------------------------------------------
def _pool_linear_kernel(x_ref, w_ref, b_ref, o_ref, *, inv_l):
    """AdaptiveAvgPool1d(1) + Flatten + (Dropout eval=identity) + Linear.

    x_ref: (TN, L, C)  -- channels lane-dense, pool over sublane axis L
    w_ref: (C, OUT_P)  -- pre-transposed, columns zero-padded to 128-multiple
    b_ref: (1, OUT_P)
    o_ref: (TN, OUT_P)
    """
    pooled = jnp.sum(x_ref[...], axis=1, dtype=jnp.float32) * inv_l        # (TN, C) f32
    out = jnp.dot(pooled, w_ref[...].astype(jnp.float32),
                  preferred_element_type=jnp.float32)
    out = out + b_ref[...].astype(jnp.float32)
    o_ref[...] = out.astype(o_ref.dtype)


def _pool_mlp_kernel(x_ref, w1_ref, b1_ref, w2_ref, b2_ref, o_ref, *, inv_l):
    """AdaptiveAvgPool1d(1) + Flatten + Linear -> ReLU -> Linear."""
    pooled = jnp.sum(x_ref[...], axis=1, dtype=jnp.float32) * inv_l        # (TN, C) f32
    h = jnp.dot(pooled, w1_ref[...].astype(jnp.float32),
                preferred_element_type=jnp.float32)
    h = jnp.maximum(h + b1_ref[...].astype(jnp.float32), 0.0)
    out = jnp.dot(h, w2_ref[...].astype(jnp.float32),
                  preferred_element_type=jnp.float32)
    out = out + b2_ref[...].astype(jnp.float32)
    o_ref[...] = out.astype(o_ref.dtype)


# ---------------------------------------------------------------------------
# Helpers
# ---------------------------------------------------------------------------
def _round_up(v, m):
    return ((v + m - 1) // m) * m


def _choose_tn(n, l, c, itemsize):
    """Largest batch tile (multiple of 8, or full N) whose double-buffered x tile fits budget."""
    per_row = max(1, l * c * itemsize)
    tn_max = max(1, _X_STREAM_BUDGET // (2 * per_row))
    if n <= tn_max:
        return n
    return max(8, (tn_max // 8) * 8)


def _pad_cols(w, b, out_p):
    out_dim = w.shape[1]
    if out_dim == out_p:
        return w, b
    pad = out_p - out_dim
    return jnp.pad(w, ((0, 0), (0, pad))), jnp.pad(b, ((0, 0), (0, pad)))


def _resident_spec(arr):
    # Same block index every grid step -> weight/bias stays pinned in VMEM (not re-DMA'd).
    nd = arr.ndim
    return pl.BlockSpec(arr.shape, lambda i, _nd=nd: (0,) * _nd)


def _compiler_params():
    return pltpu.CompilerParams(
        dimension_semantics=("parallel",),
        vmem_limit_bytes=_VMEM_LIMIT_BYTES,
    )


# ---------------------------------------------------------------------------
# Wrapper
# ---------------------------------------------------------------------------
def final_block_forward(x, params, *, pretrain, head):
    """x: (N, C, L), same axis convention as nn.AdaptiveAvgPool1d's input."""
    N, C, L = x.shape
    dtype = x.dtype
    itemsize = jnp.dtype(dtype).itemsize

    # Lane-dense layout: channels on the 128-lane axis; pool reduces over sublanes.
    x_t = jnp.transpose(x, (0, 2, 1))                      # (N, L, C)

    tn = _choose_tn(N, L, C, itemsize)
    n_pad = _round_up(N, tn)
    if n_pad != N:
        x_t = jnp.pad(x_t, ((0, n_pad - N), (0, 0), (0, 0)))
    grid = (n_pad // tn,)
    inv_l = 1.0 / float(L)

    x_spec = pl.BlockSpec((tn, L, C), lambda i: (i, 0, 0))
    x_bytes = n_pad * L * C * itemsize

    if pretrain or head == "linear":
        if pretrain:
            w, b = params["cls_w"], params["cls_b"]        # (C, num_classes), (1, num_classes)
        else:
            w, b = params["head_w1"], params["head_b1"]    # (C, feat_dim), (1, feat_dim)
        out_dim = w.shape[1]
        out_p = max(_LANE, _round_up(out_dim, _LANE))
        w_p, b_p = _pad_cols(w, b, out_p)
        cost = pl.CostEstimate(
            flops=2 * n_pad * C * out_p,
            transcendentals=0,
            bytes_accessed=x_bytes
            + w_p.size * w_p.dtype.itemsize + b_p.size * b_p.dtype.itemsize
            + n_pad * out_p * itemsize,
        )
        out = pl.pallas_call(
            functools.partial(_pool_linear_kernel, inv_l=inv_l),
            out_shape=jax.ShapeDtypeStruct((n_pad, out_p), dtype),
            grid=grid,
            in_specs=[x_spec, _resident_spec(w_p), _resident_spec(b_p)],
            out_specs=pl.BlockSpec((tn, out_p), lambda i: (i, 0)),
            compiler_params=_compiler_params(),
            cost_estimate=cost,
        )(x_t, w_p, b_p)
        return out[:N, :out_dim]

    # head == 'mlp'
    w1, b1 = params["head_w1"], params["head_b1"]          # (C, C), (1, C)
    w2, b2 = params["head_w2"], params["head_b2"]          # (C, feat_dim), (1, feat_dim)
    out_dim = w2.shape[1]
    out_p = max(_LANE, _round_up(out_dim, _LANE))
    w2_p, b2_p = _pad_cols(w2, b2, out_p)
    cost = pl.CostEstimate(
        flops=2 * n_pad * C * C + 2 * n_pad * C * out_p,
        transcendentals=0,
        bytes_accessed=x_bytes
        + w1.size * w1.dtype.itemsize + b1.size * b1.dtype.itemsize
        + w2_p.size * w2_p.dtype.itemsize + b2_p.size * b2_p.dtype.itemsize
        + n_pad * out_p * itemsize,
    )
    out = pl.pallas_call(
        functools.partial(_pool_mlp_kernel, inv_l=inv_l),
        out_shape=jax.ShapeDtypeStruct((n_pad, out_p), dtype),
        grid=grid,
        in_specs=[x_spec,
                  _resident_spec(w1), _resident_spec(b1),
                  _resident_spec(w2_p), _resident_spec(b2_p)],
        out_specs=pl.BlockSpec((tn, out_p), lambda i: (i, 0)),
        compiler_params=_compiler_params(),
        cost_estimate=cost,
    )(x_t, w1, b1, w2_p, b2_p)
    return out[:N, :out_dim]


# ---------------------------------------------------------------------------
# Deterministic parameter construction (synthetic; no checkpoint loading)
# ---------------------------------------------------------------------------
def make_params(key, in_channels, num_classes, feat_dim, dtype=jnp.float32):
    ks = jax.random.split(key, 6)
    scale_c = 1.0 / jnp.sqrt(in_channels)
    return {
        "cls_w":  (jax.random.normal(ks[0], (in_channels, num_classes)) * scale_c).astype(dtype),
        "cls_b":  (jax.random.normal(ks[1], (1, num_classes)) * scale_c).astype(dtype),
        "head_w1": (jax.random.normal(ks[2], (in_channels, in_channels)) * scale_c).astype(dtype),
        "head_b1": (jax.random.normal(ks[3], (1, in_channels)) * scale_c).astype(dtype),
        "head_w2": (jax.random.normal(ks[4], (in_channels, feat_dim)) * scale_c).astype(dtype),
        "head_b2": (jax.random.normal(ks[5], (1, feat_dim)) * scale_c).astype(dtype),
    }


# ---------------------------------------------------------------------------
# Pure-JAX reference (for sanity check)
# ---------------------------------------------------------------------------
def reference_forward(x, params, *, pretrain, head):
    pooled = jnp.mean(x.astype(jnp.float32), axis=-1)      # (N, C)
    if pretrain:
        return pooled @ params["cls_w"] + params["cls_b"]
    if head == "mlp":
        h = jnp.maximum(pooled @ params["head_w1"] + params["head_b1"], 0.0)
        return h @ params["head_w2"] + params["head_b2"]
    return pooled @ params["head_w1"] + params["head_b1"]


if __name__ == "__main__":
    # Small shapes consistent with the module's forward:
    #   x: (batch, in_channels, seq_len) for AdaptiveAvgPool1d
    N, C, L = 2, 32, 8
    NUM_CLASSES, FEAT_DIM = 10, 16

    key = jax.random.PRNGKey(0)
    kx, kp = jax.random.split(key)
    x = jax.random.normal(kx, (N, C, L), dtype=jnp.float32)
    params = make_params(kp, C, NUM_CLASSES, FEAT_DIM)

    # pretrain=True path (classifier)
    out_cls = final_block_forward(x, params, pretrain=True, head="mlp")
    jax.block_until_ready(out_cls)
    ref_cls = reference_forward(x, params, pretrain=True, head="mlp")
    assert out_cls.shape == (N, NUM_CLASSES)
    assert jnp.allclose(out_cls, ref_cls, atol=1e-5, rtol=1e-5)

    # pretrain=False path (mlp head)
    out_mlp = final_block_forward(x, params, pretrain=False, head="mlp")
    jax.block_until_ready(out_mlp)
    ref_mlp = reference_forward(x, params, pretrain=False, head="mlp")
    assert out_mlp.shape == (N, FEAT_DIM)
    assert jnp.allclose(out_mlp, ref_mlp, atol=1e-5, rtol=1e-5)

    # pretrain=False path (linear head)
    out_lin = final_block_forward(x, params, pretrain=False, head="linear")
    jax.block_until_ready(out_lin)
    ref_lin = reference_forward(x, params, pretrain=False, head="linear")
    assert out_lin.shape == (N, C)
    assert jnp.allclose(out_lin, ref_lin, atol=1e-5, rtol=1e-5)

    print("KERNEL_OK")
</pallas_src>

<mosaic_0001>
module attributes {stable_mosaic.version = 11 : i64} {
  func.func @_pool_linear_kernel(%arg0: i32, %arg1: memref<2x8x32xf32, #tpu.memory_space<vmem>>, %arg2: memref<32x128xf32, #tpu.memory_space<vmem>>, %arg3: memref<1x128xf32, #tpu.memory_space<vmem>>, %arg4: memref<2x128xf32, #tpu.memory_space<vmem>>) attributes {dimension_semantics = [#tpu.dimension_semantics<parallel>], iteration_bounds = array<i64: 1>, scalar_prefetch = 0 : i64, scratch_operands = 0 : i64, tpu.core_type = #tpu.core_type<tc>, window_params = [{transform_indices = @transform_0, window_bounds = array<i64: 2, 8, 32>}, {pipeline_mode = #tpu.pipeline_mode<synchronous>, transform_indices = @transform_1, window_bounds = array<i64: 32, 128>}, {pipeline_mode = #tpu.pipeline_mode<synchronous>, transform_indices = @transform_2, window_bounds = array<i64: 1, 128>}, {transform_indices = @transform_3, window_bounds = array<i64: 2, 128>}]} {
    %c0 = arith.constant 0 : index
    %c0_0 = arith.constant 0 : index
    %c0_1 = arith.constant 0 : index
    %0 = vector.load %arg1[%c0, %c0_0, %c0_1] : memref<2x8x32xf32, #tpu.memory_space<vmem>>, vector<2x8x32xf32>
    %cst = arith.constant dense<0.000000e+00> : vector<2x32xf32>
    %1 = vector.multi_reduction <add>, %0, %cst [1] : vector<2x8x32xf32> to vector<2x32xf32>
    %cst_2 = arith.constant 1.250000e-01 : f32
    %2 = vector.broadcast %cst_2 : f32 to vector<2x32xf32>
    %3 = arith.mulf %1, %2 : vector<2x32xf32>
    %c0_3 = arith.constant 0 : index
    %c0_4 = arith.constant 0 : index
    %4 = vector.load %arg2[%c0_3, %c0_4] : memref<32x128xf32, #tpu.memory_space<vmem>>, vector<32x128xf32>
    %cst_5 = arith.constant dense<0.000000e+00> : vector<2x128xf32>
    %5 = tpu.matmul %3, %4, %cst_5 {dimension_numbers = #tpu.dot_dimension_numbers<[1], [0], [0], [1], [0, 0, 1, 1], [], []>} : vector<2x32xf32>, vector<32x128xf32>, vector<2x128xf32> -> vector<2x128xf32>
    %c0_6 = arith.constant 0 : index
    %c0_7 = arith.constant 0 : index
    %6 = vector.load %arg3[%c0_6, %c0_7] : memref<1x128xf32, #tpu.memory_space<vmem>>, vector<1x128xf32>
    %7 = vector.broadcast %6 : vector<1x128xf32> to vector<2x128xf32>
    %8 = arith.addf %5, %7 : vector<2x128xf32>
    %c0_8 = arith.constant 0 : index
    %c0_9 = arith.constant 0 : index
    %9 = vector.load %arg4[%c0_8, %c0_9] : memref<2x128xf32, #tpu.memory_space<vmem>>, vector<2x128xf32>
    tpu.vector_store %arg4[%c0_8, %c0_9], %8 {strides = array<i32>} : memref<2x128xf32, #tpu.memory_space<vmem>>, vector<2x128xf32>,
    return
  }
  func.func @transform_0(%arg0: i32) -> (i32, i32, i32) {
    %c0_i32 = arith.constant 0 : i32
    %c0_i32_0 = arith.constant 0 : i32
    %c0_i32_1 = arith.constant 0 : i32
    return %arg0, %c0_i32, %c0_i32_0 : i32, i32, i32
  }
  func.func @transform_1(%arg0: i32) -> (i32, i32) {
    %c0_i32 = arith.constant 0 : i32
    %c0_i32_0 = arith.constant 0 : i32
    %c0_i32_1 = arith.constant 0 : i32
    return %c0_i32, %c0_i32_0 : i32, i32
  }
  func.func @transform_2(%arg0: i32) -> (i32, i32) {
    %c0_i32 = arith.constant 0 : i32
    %c0_i32_0 = arith.constant 0 : i32
    %c0_i32_1 = arith.constant 0 : i32
    return %c0_i32, %c0_i32_0 : i32, i32
  }
  func.func @transform_3(%arg0: i32) -> (i32, i32) {
    %c0_i32 = arith.constant 0 : i32
    %c0_i32_0 = arith.constant 0 : i32
    return %arg0, %c0_i32 : i32, i32
  }
}

</mosaic_0001>

<llo_original>
// kernel: tpu_custom_call.1
$region0: #{tpu_custom_call.1}
  #allocation0 [shape = 'u32[]', space=smem, size = 0x4, offset = 0x4, fixed_abs, tag = 'smem constant byte address 0x4 - core index']
  #allocation1 [shape = 'u32[72,128]{1,0:T(1,128)}', space=vmem, size = 0x9000, scoped, tag = 'internal scratch']
  %s0 = inlined_call_operand.hbm [shape: f32[2,8,32], index: 0, kind: input, shape index: {}]
  %s1 = inlined_call_operand.hbm [shape: f32[32,128], index: 1, kind: input, shape index: {}]
  %s2 = inlined_call_operand.vmem [shape: f32[1,128], index: 2, kind: input, shape index: {}]
  %s3 = inlined_call_operand.hbm [shape: f32[2,128], index: 3, kind: output, shape index: {}]
  %s4 = sld [smem:[#allocation0]]
  $region30: #{tpu_custom_call.1} parent=0
    _
  %s6 = ssub.s32 1, %s4
  %s7 = scalar_select 0, %s6, %s4
  $region1: #{tpu_custom_call.1} parent=0
    #allocation2 [shape = 'u8[8192]{0}', space=vmem, size = 0x2000, scoped, tag = 'input window, operand 0, single buffered']
    #allocation3 [shape = 's32[1]{0}', space=sflag, size = 0x4, scoped, tag = 'scoped memory for tpu_custom_call.1']
    #allocation4 [shape = 's32[1]{0}', space=sflag, size = 0x4, scoped, tag = 'scoped memory for tpu_custom_call.1']
    #allocation5 [shape = 'u8[16384]{0}', space=vmem, size = 0x4000, scoped, tag = 'input window, operand 1, single buffered']
    #allocation6 [shape = 's32[1]{0}', space=sflag, size = 0x4, scoped, tag = 'scoped memory for tpu_custom_call.1']
    #allocation7 [shape = 'u8[1024]{0}', space=vmem, size = 0x400, scoped, tag = 'output window, operand 0, single buffered']
    %8 = vsyncpa [#allocation3], 0
    %9 = vsyncpa [#allocation6], 0
    %10 = vsyncpa [#allocation4], 0
    // Predicated region
    $region2: #{tpu_custom_call.1} parent=1 // pred_check
      _
    $region3: #{tpu_custom_call.1} parent=1 // pred_check_branch
      %12 = sbr.rel (0) target = $region5
    $region4: #{tpu_custom_call.1} parent=1 // pred_region
      %14 = vsyncadd [#allocation3], 0
      %s15 = sshll.u32 %s0, 4
      %s16 = int_to_ptr.hbm [resolvable:$true] %s15
      %s17 = sshll.u32 [#allocation2], 4
      %s18 = int_to_ptr.vmem [resolvable:$true] %s17
      %23 = dma.hbm_to_vmem [thread:$0]  %s16, 256, %s18, [#allocation3], 128, 128, 8
    $region5: #{tpu_custom_call.1} parent=1 // pred_fallthru
      _
    // Predicated region
    $region6: #{tpu_custom_call.1} parent=1 // pred_check
      _
    $region7: #{tpu_custom_call.1} parent=1 // pred_check_branch
      %25 = sbr.rel (0) target = $region9
    $region8: #{tpu_custom_call.1} parent=1 // pred_region
      %27 = vsyncadd [#allocation6], 0
      %s28 = sshll.u32 %s1, 4
      %s29 = int_to_ptr.hbm [resolvable:$true] %s28
      %s30 = sshll.u32 [#allocation5], 4
      %s31 = int_to_ptr.vmem [resolvable:$true] %s30
      %36 = dma.hbm_to_vmem [thread:$0]  %s29, 512, %s31, [#allocation6], 128, 128, 8
    $region9: #{tpu_custom_call.1} parent=1 // pred_fallthru
      _
    // Predicated region
    $region10: #{tpu_custom_call.1} parent=1 // pred_check
      _
    $region11: #{tpu_custom_call.1} parent=1 // pred_check_branch
      %38 = sbr.rel (0) target = $region13
    $region12: #{tpu_custom_call.1} parent=1 // pred_region
      _
    $region13: #{tpu_custom_call.1} parent=1 // pred_fallthru
      _
    // Predicated region
    $region14: #{tpu_custom_call.1} parent=1 // pred_check
      _
    $region15: #{tpu_custom_call.1} parent=1 // pred_check_branch
      %40 = sbr.rel (0) target = $region17
    $region16: #{tpu_custom_call.1} parent=1 // pred_region
      %42 = dma.done [#allocation3], 256
    $region17: #{tpu_custom_call.1} parent=1 // pred_fallthru
      _
    // Predicated region
    $region18: #{tpu_custom_call.1} parent=1 // pred_check
      _
    $region19: #{tpu_custom_call.1} parent=1 // pred_check_branch
      %44 = sbr.rel (0) target = $region21
    $region20: #{tpu_custom_call.1} parent=1 // pred_region
      %46 = dma.done [#allocation6], 512
    $region21: #{tpu_custom_call.1} parent=1 // pred_fallthru
      _
    %v47 = vld [vmem:[#allocation2] sm:$0xff]
    %v48 = vld [vmem:[#allocation2 + $0x8] sm:$0xff]
    %vm49 = vcmask 261120
    %v50 = vsel %vm49, %v47, 0.0
    %v51 = vrot.slane %v50, 4
    %v52 = vadd.f32 %v50, %v51
    %v53 = vrot.slane %v52, 2
    %v54 = vadd.f32 %v52, %v53
    %v55 = vrot.slane %v54, 1
    %v56 = vadd.f32 %v54, %v55
    %v57 = vsel %vm49, %v48, 0.0
    %v58 = vrot.slane %v57, 4
    %v59 = vadd.f32 %v57, %v58
    %v60 = vrot.slane %v59, 2
    %v61 = vadd.f32 %v59, %v60
    %v62 = vrot.slane %v61, 1
    %v63 = vadd.f32 %v61, %v62
    %v64 = vmul.f32 %v56, 0.125
    %v65 = vmul.f32 %v63, 0.125
    %v66 = vld [vmem:[#allocation5] sm:$0xff]
    %v67 = vld [vmem:[#allocation5 + $0x8] sm:$0xff]
    %v68 = vld [vmem:[#allocation5 + $0x10] sm:$0xff]
    %v69 = vld [vmem:[#allocation5 + $0x18] sm:$0xff]
    %v70 = vld [vmem:[%s2] sm:$0x1]
    %v72 = vperm.slane %v70, 0
    %vm76 = vcmask 1041409
    %v77 = vsel %vm76, %v65, %v64
    %v78 = vsel %vm49, %v77, 0
    %80 = vmatpush.msra.mxu0 0.0
    %81 = vmatpush.msra.mxu0 0.0
    %82 = vmatpush.msra.mxu0 0.0
    %83 = vmatpush.msra.mxu0 0.0
    %84 = vmatpush.msra.mxu0 0.0
    %85 = vmatpush.msra.mxu0 0.0
    %86 = vmatpush.msra.mxu0 0.0
    %87 = vmatpush.msra.mxu0 0.0
    %88 = vmatpush.msra.mxu0 0.0
    %89 = vmatpush.msra.mxu0 0.0
    %90 = vmatpush.msra.mxu0 0.0
    %91 = vmatpush.msra.mxu0 0.0
    %92 = vmatpush.msra.mxu0 %v69
    %93 = vmatpush.msra.mxu0 %v68
    %94 = vmatpush.msra.mxu0 %v67
    %95 = vmatpush.msra.mxu0 %v66
    %96 = vmatmul.f32.gmra.mxu0 %v78
    %v97 = vpop.f32.mrf.mxu0
    %v98 = vadd.f32 %v72, %v97
    %99 = vdwg.mxu0
    %100 = vst [vmem:[#allocation7] sm:$0x3] %v98
    // Predicated region
    $region22: #{tpu_custom_call.1} parent=1 // pred_check
      _
    $region23: #{tpu_custom_call.1} parent=1 // pred_check_branch
      %102 = sbr.rel (0) target = $region25
    $region24: #{tpu_custom_call.1} parent=1 // pred_region
      %104 = vsyncadd [#allocation4], 0
      %s106 = sshll.u32 [#allocation7], 4
      %s107 = int_to_ptr.vmem [resolvable:$true] %s106
      %s108 = sshll.u32 %s3, 4
      %s109 = int_to_ptr.hbm [resolvable:$true] %s108
      %111 = dma.vmem_to_hbm [thread:$0]  %s107, 32, %s109, [#allocation4]
    $region25: #{tpu_custom_call.1} parent=1 // pred_fallthru
      _
    // Predicated region
    $region26: #{tpu_custom_call.1} parent=1 // pred_check
      _
    $region27: #{tpu_custom_call.1} parent=1 // pred_check_branch
      %113 = sbr.rel (0) target = $region29
    $region28: #{tpu_custom_call.1} parent=1 // pred_region
      %115 = dma.done [#allocation4], 32
    $region29: #{tpu_custom_call.1} parent=1 // pred_fallthru
      _
    %116 = vsyncpa [#allocation3], 1
    %117 = vsyncpa [#allocation6], 1
    %118 = vsyncpa [#allocation4], 1

</llo_original>
